<compile_context>
chip_gen: v5e
topology: v5e:2x2
jax: 0.10.0
libtpu: 0.0.40
codegen_flags: <defaults>
</compile_context>

<pallas_src>
import functools

import numpy as np
import jax
import jax.numpy as jnp
from jax.experimental import pallas as pl
from jax.experimental.pallas import tpu as pltpu


# ----------------------------------------------------------------------------------
# Fused DCGRU cell kernel: gate diffusion-conv -> r,u -> candidate diffusion-conv ->
# tanh -> GRU blend -> optional projection, all resident in VMEM.
# ----------------------------------------------------------------------------------
def _dcgru_cell_kernel(x_ref, h_ref, sup_ref, wg_ref, bg_ref, wc_ref, bc_ref,
                       *rest, K, has_proj, proj_dim):
    if has_proj:
        wp_ref, bp_ref, newh_ref, proj_ref = rest
    else:
        (newh_ref,) = rest
        wp_ref = bp_ref = proj_ref = None

    x3 = x_ref[...]                          # (Bt, N, D) f32
    h3 = h_ref[...]                          # (Bt, N, U) f32
    Bt, N, D = x3.shape
    U = h3.shape[-1]
    sup = sup_ref[...]                       # (S, N, N) bf16 (cast wrapper-side)
    S = sup.shape[0]

    # Hoist the per-support broadcast once: each diffusion step is then a clean batched
    # (Bt,N,N)@(Bt,N,F) MXU matmul with bf16 operands and f32 accumulation.
    sup_b = [jnp.broadcast_to(sup[s], (Bt, N, N)) for s in range(S)]

    def bmm(Tb, v):                          # (Bt,N,N) bf16  x  (Bt,N,F) f32 -> f32
        return jnp.einsum('bij,bjf->bif', Tb, v.astype(jnp.bfloat16),
                          preferred_element_type=jnp.float32)

    def chain(xh):
        """Literal transcription of DiffusionGraphConv's Chebyshev loop on the merged
        (Bt, N, F) features -- including the carry of x0/x1 across supports, exactly as
        the torch code does.  bf16 rounding does not compound: every recurrence step
        re-accumulates in f32 and only re-rounds the matmul operands."""
        x0 = xh
        terms = [x0]
        if K > 0:
            for Tb in sup_b:
                x1 = bmm(Tb, x0)
                terms.append(x1)
                for _ in range(2, K + 1):
                    x2 = 2.0 * bmm(Tb, x1) - x0
                    terms.append(x2)
                    x1, x0 = x2, x1
        # Lane concat of whole-F terms == weight row order m*F + f (no interleave).
        return jnp.concatenate(terms, axis=-1)          # (Bt, N, M*F)

    def dense(a3, w_ref_, b_ref_):
        """(Bt,N,Kd) x (Kd,O): free leading-dim merge to 2-D so the MXU sees Bt*N rows."""
        kd = a3.shape[-1]
        o = w_ref_.shape[-1]
        a2 = a3.reshape(Bt * N, kd).astype(jnp.bfloat16)
        y = jnp.dot(a2, w_ref_[...], preferred_element_type=jnp.float32) + b_ref_[...]
        return y.reshape(Bt, N, o)

    # --- gate branch: diffuse [x | h], one fused (rows, M*F)@(M*F, 2U) dot ------------
    xh_g = jnp.concatenate([x3, h3], axis=-1)           # (Bt, N, F)
    gate = jax.nn.sigmoid(dense(chain(xh_g), wg_ref, bg_ref))   # (Bt, N, 2U) f32
    r = gate[..., :U]
    u = gate[..., U:]

    # --- candidate branch: diffuse [x | r*h] ------------------------------------------
    xh_c = jnp.concatenate([x3, r * h3], axis=-1)
    c = jnp.tanh(dense(chain(xh_c), wc_ref, bc_ref))    # (Bt, N, U) f32

    # --- GRU blend (kept f32 on the VPU) ----------------------------------------------
    new_h = u * h3 + (1.0 - u) * c                      # (Bt, N, U)
    newh_ref[...] = new_h

    if has_proj:
        if proj_dim == 1:
            # num_proj == 1 head: VPU multiply + lane reduction instead of a wasteful
            # 1-output-column MXU matmul.  wp_ref is the (1, U) f32 projection row.
            proj_ref[...] = (jnp.sum(new_h * wp_ref[...], axis=-1, keepdims=True)
                             + bp_ref[...])
        else:
            proj_ref[...] = dense(new_h, wp_ref, bp_ref)


# ----------------------------------------------------------------------------------
# Wrapper mirroring DCGRUCell.forward(inputs, supports, state, num_nodes)
# ----------------------------------------------------------------------------------
class DCGRUCellPallas:
    def __init__(self, key, input_dim, num_units, max_diffusion_step,
                 supports_len=2, num_proj=None):
        self.input_dim = input_dim
        self.num_units = num_units
        self.K = max_diffusion_step
        self.num_proj = num_proj
        self.supports_len = supports_len
        self.M = supports_len * max_diffusion_step + 1
        F = input_dim + num_units
        M = self.M

        def xavier(k, shape, gain=1.414):
            fan_in, fan_out = shape
            std = gain * np.sqrt(2.0 / (fan_in + fan_out))
            return std * jax.random.normal(k, shape, dtype=jnp.float32)

        kg, kc, kbg, kbc, kp, kbp = jax.random.split(key, 6)
        # Torch-layout parameters (used by the pure-JAX reference).
        self.params = {
            "Wg": xavier(kg, (F * M, 2 * num_units)),
            "bg": 0.01 * jax.random.normal(kbg, (2 * num_units,), dtype=jnp.float32),
            "Wc": xavier(kc, (F * M, num_units)),
            "bc": 0.01 * jax.random.normal(kbc, (num_units,), dtype=jnp.float32),
        }
        if num_proj is not None:
            self.params["Wp"] = xavier(kp, (num_units, num_proj), gain=1.0)
            self.params["bp"] = 0.01 * jax.random.normal(kbp, (num_proj,),
                                                         dtype=jnp.float32)

        # Kernel-layout parameters (prepared once).  Torch row index is f*M + m; the
        # kernel concatenates whole-F diffusion terms so it wants m*F + f.  Weights are
        # stored in bf16 (halves DMA/VMEM and gives single-pass MXU matmuls).
        def reorder(W, O):
            return jnp.asarray(W).reshape(F, M, O).transpose(1, 0, 2).reshape(M * F, O)

        U = num_units
        self._kp = {
            "wg": reorder(self.params["Wg"], 2 * U).astype(jnp.bfloat16),
            "bg": self.params["bg"].reshape(1, 2 * U),
            "wc": reorder(self.params["Wc"], U).astype(jnp.bfloat16),
            "bc": self.params["bc"].reshape(1, U),
        }
        if num_proj is not None:
            if num_proj == 1:
                self._kp["wp"] = self.params["Wp"].reshape(1, U)      # f32 row (VPU path)
                self._kp["bp"] = self.params["bp"].reshape(1, 1)
            else:
                self._kp["wp"] = self.params["Wp"].astype(jnp.bfloat16)
                self._kp["bp"] = self.params["bp"].reshape(1, num_proj)

    def __call__(self, inputs, supports, state, num_nodes):
        B = inputs.shape[0]
        N = num_nodes
        D = self.input_dim
        U = self.num_units
        P = self.num_proj
        has_proj = P is not None
        assert supports.shape[0] == self.supports_len

        x3 = inputs.reshape(B, N, D)       # free metadata reshapes in HBM
        h3 = state.reshape(B, N, U)
        sup_bf = supports.astype(jnp.bfloat16)

        # Batch tile: aim for ~512 rows (Bt*N) per grid step so the auto-pipeline has
        # several steps to overlap DMA with compute while per-step VMEM stays bounded.
        target_rows = 512
        Bt = max(1, min(B, target_rows // max(N, 1)))
        while B % Bt != 0:
            Bt -= 1
        grid = (B // Bt,)

        def inv_spec(shape):               # grid-invariant block (weights / supports)
            nz = (0,) * len(shape)
            return pl.BlockSpec(shape, lambda i, z=nz: z)

        def bspec(trailing):               # batch-tiled block
            nt = len(trailing)
            return pl.BlockSpec((Bt,) + trailing, lambda i, n=nt: (i,) + (0,) * n)

        kp = self._kp
        args = [x3, h3, sup_bf, kp["wg"], kp["bg"], kp["wc"], kp["bc"]]
        in_specs = [bspec((N, D)), bspec((N, U)), inv_spec(sup_bf.shape),
                    inv_spec(kp["wg"].shape), inv_spec(kp["bg"].shape),
                    inv_spec(kp["wc"].shape), inv_spec(kp["bc"].shape)]
        if has_proj:
            args += [kp["wp"], kp["bp"]]
            in_specs += [inv_spec(kp["wp"].shape), inv_spec(kp["bp"].shape)]
            out_shape = (jax.ShapeDtypeStruct((B, N, U), jnp.float32),
                         jax.ShapeDtypeStruct((B, N, P), jnp.float32))
            out_specs = (bspec((N, U)), bspec((N, P)))
        else:
            out_shape = jax.ShapeDtypeStruct((B, N, U), jnp.float32)
            out_specs = bspec((N, U))

        kernel = functools.partial(_dcgru_cell_kernel, K=self.K,
                                   has_proj=has_proj, proj_dim=(P or 0))

        # On v7x, consider pltpu.CORE_PARALLEL for the batch axis if xprof shows the
        # "parallel" axis is not actually sharded across the two TensorCores.
        result = pl.pallas_call(
            kernel,
            out_shape=out_shape,
            grid=grid,
            in_specs=in_specs,
            out_specs=out_specs,
            compiler_params=pltpu.CompilerParams(
                dimension_semantics=("parallel",),
                vmem_limit_bytes=32 * 1024 * 1024),
        )(*args)

        if has_proj:
            newh, out = result
            new_state = newh.reshape(B, N * U)          # free reshapes
            output = out.reshape(B, N * P)
            return output, new_state
        new_state = result.reshape(B, N * U)
        return new_state, new_state


# ----------------------------------------------------------------------------------
# Pure-JAX reference: literal transcription of the torch code (incl. the x0/x1 carry
# across supports inside DiffusionGraphConv) for verification.
# ----------------------------------------------------------------------------------
def _dconv_ref(x_cat, supports, W, b, K, output_dim):
    B, N, F = x_cat.shape
    x0 = jnp.transpose(x_cat, (1, 2, 0)).reshape(N, F * B)
    xs = [x0]
    if K > 0:
        for s in range(supports.shape[0]):
            T = supports[s]
            x1 = T @ x0
            xs.append(x1)
            for _k in range(2, K + 1):
                x2 = 2.0 * (T @ x1) - x0
                xs.append(x2)
                x1, x0 = x2, x1
    M = len(xs)
    x = jnp.stack(xs, 0).reshape(M, N, F, B)
    x = jnp.transpose(x, (3, 1, 2, 0)).reshape(B * N, F * M)
    return (x @ W + b).reshape(B, N * output_dim)


def dcgru_ref(inputs, state, supports, params, N, K, input_dim, U, num_proj):
    B = inputs.shape[0]
    x_in = inputs.reshape(B, N, input_dim)
    h = state.reshape(B, N, U)
    x_cat = jnp.concatenate([x_in, h], axis=-1)
    value = jax.nn.sigmoid(_dconv_ref(x_cat, supports, params["Wg"], params["bg"],
                                      K, 2 * U))
    value = value.reshape(B, N, 2 * U)
    r = value[:, :, :U].reshape(B, N * U)
    u = value[:, :, U:].reshape(B, N * U)
    x_cat2 = jnp.concatenate([x_in, (r * state).reshape(B, N, U)], axis=-1)
    c = jnp.tanh(_dconv_ref(x_cat2, supports, params["Wc"], params["bc"], K, U))
    new_state = u * state + (1.0 - u) * c
    if num_proj is not None:
        out = (new_state.reshape(B * N, U) @ params["Wp"]
               + params["bp"]).reshape(B, N * num_proj)
    else:
        out = new_state
    return out, new_state


if __name__ == "__main__":
    B, N = 2, 16
    input_dim, num_units = 4, 32
    max_diffusion_step = 2
    num_proj = 1                       # docstring: "defaults to 1 (speed)"
    supports_len = 2                   # filter_type = 'dual_random_walk'

    key = jax.random.PRNGKey(0)
    k_param, k_x, k_h, k_a = jax.random.split(key, 4)

    cell = DCGRUCellPallas(k_param, input_dim, num_units, max_diffusion_step,
                           supports_len=supports_len, num_proj=num_proj)

    inputs = jax.random.normal(k_x, (B, N * input_dim), dtype=jnp.float32)
    state = jax.random.normal(k_h, (B, N * num_units), dtype=jnp.float32)

    # Dense random-walk supports: P = D^-1 A and its reverse-direction counterpart.
    # TODO(synk): torch.sparse.mm supports are realized as dense (N, N) matmuls on TPU.
    A = jax.random.uniform(k_a, (N, N), dtype=jnp.float32)
    P_fwd = A / jnp.sum(A, axis=1, keepdims=True)
    P_bwd = A.T / jnp.sum(A.T, axis=1, keepdims=True)
    supports = jnp.stack([P_fwd, P_bwd], axis=0)           # (S, N, N)

    output, new_state = cell(inputs, supports, state, N)
    output = jax.block_until_ready(output)
    new_state = jax.block_until_ready(new_state)

    out_ref, ns_ref = dcgru_ref(inputs, state, supports, cell.params,
                                N, max_diffusion_step, input_dim, num_units, num_proj)

    # Kernel runs single-pass bf16 MXU operands (weights, supports, activations at the
    # dots) with f32 accumulation; the reference is full default-precision f32, so allow
    # bf16-level rounding of the diffusion chain + gate/candidate dots.
    np.testing.assert_allclose(np.asarray(new_state), np.asarray(ns_ref),
                               rtol=3e-2, atol=3e-2)
    np.testing.assert_allclose(np.asarray(output), np.asarray(out_ref),
                               rtol=3e-2, atol=3e-2)
    print("KERNEL_OK")
</pallas_src>

<mosaic_0001>
module attributes {stable_mosaic.version = 11 : i64} {
  func.func @_dcgru_cell_kernel(%arg0: i32, %arg1: memref<2x16x4xf32, #tpu.memory_space<vmem>>, %arg2: memref<2x16x32xf32, #tpu.memory_space<vmem>>, %arg3: memref<2x16x16xbf16, #tpu.memory_space<vmem>>, %arg4: memref<180x64xbf16, #tpu.memory_space<vmem>>, %arg5: memref<1x64xf32, #tpu.memory_space<vmem>>, %arg6: memref<180x32xbf16, #tpu.memory_space<vmem>>, %arg7: memref<1x32xf32, #tpu.memory_space<vmem>>, %arg8: memref<1x32xf32, #tpu.memory_space<vmem>>, %arg9: memref<1x1xf32, #tpu.memory_space<vmem>>, %arg10: memref<2x16x32xf32, #tpu.memory_space<vmem>>, %arg11: memref<2x16x1xf32, #tpu.memory_space<vmem>>) attributes {dimension_semantics = [#tpu.dimension_semantics<parallel>], iteration_bounds = array<i64: 1>, scalar_prefetch = 0 : i64, scratch_operands = 0 : i64, tpu.core_type = #tpu.core_type<tc>, window_params = [{transform_indices = @transform_0, window_bounds = array<i64: 2, 16, 4>}, {transform_indices = @transform_1, window_bounds = array<i64: 2, 16, 32>}, {pipeline_mode = #tpu.pipeline_mode<synchronous>, transform_indices = @transform_2, window_bounds = array<i64: 2, 16, 16>}, {pipeline_mode = #tpu.pipeline_mode<synchronous>, transform_indices = @transform_3, window_bounds = array<i64: 180, 64>}, {pipeline_mode = #tpu.pipeline_mode<synchronous>, transform_indices = @transform_4, window_bounds = array<i64: 1, 64>}, {pipeline_mode = #tpu.pipeline_mode<synchronous>, transform_indices = @transform_5, window_bounds = array<i64: 180, 32>}, {pipeline_mode = #tpu.pipeline_mode<synchronous>, transform_indices = @transform_6, window_bounds = array<i64: 1, 32>}, {pipeline_mode = #tpu.pipeline_mode<synchronous>, transform_indices = @transform_7, window_bounds = array<i64: 1, 32>}, {pipeline_mode = #tpu.pipeline_mode<synchronous>, transform_indices = @transform_8, window_bounds = array<i64: 1, 1>}, {transform_indices = @transform_9, window_bounds = array<i64: 2, 16, 32>}, {transform_indices = @transform_10, window_bounds = array<i64: 2, 16, 1>}]} {
    %c0 = arith.constant 0 : index
    %c0_0 = arith.constant 0 : index
    %c0_1 = arith.constant 0 : index
    %0 = vector.load %arg1[%c0, %c0_0, %c0_1] : memref<2x16x4xf32, #tpu.memory_space<vmem>>, vector<2x16x4xf32>
    %c0_2 = arith.constant 0 : index
    %c0_3 = arith.constant 0 : index
    %c0_4 = arith.constant 0 : index
    %1 = vector.load %arg2[%c0_2, %c0_3, %c0_4] : memref<2x16x32xf32, #tpu.memory_space<vmem>>, vector<2x16x32xf32>
    %c0_5 = arith.constant 0 : index
    %c0_6 = arith.constant 0 : index
    %c0_7 = arith.constant 0 : index
    %2 = vector.load %arg3[%c0_5, %c0_6, %c0_7] : memref<2x16x16xbf16, #tpu.memory_space<vmem>>, vector<2x16x16xbf16>
    %3 = vector.extract_strided_slice %2 {offsets = [0, 0, 0], sizes = [1, 16, 16], strides = [1, 1, 1]} : vector<2x16x16xbf16> to vector<1x16x16xbf16>
    %4 = vector.shape_cast %3 : vector<1x16x16xbf16> to vector<16x16xbf16>
    %5 = vector.shape_cast %4 : vector<16x16xbf16> to vector<1x16x16xbf16>
    %6 = vector.broadcast %5 : vector<1x16x16xbf16> to vector<2x16x16xbf16>
    %7 = vector.extract_strided_slice %2 {offsets = [1, 0, 0], sizes = [1, 16, 16], strides = [1, 1, 1]} : vector<2x16x16xbf16> to vector<1x16x16xbf16>
    %8 = vector.shape_cast %7 : vector<1x16x16xbf16> to vector<16x16xbf16>
    %9 = vector.shape_cast %8 : vector<16x16xbf16> to vector<1x16x16xbf16>
    %10 = vector.broadcast %9 : vector<1x16x16xbf16> to vector<2x16x16xbf16>
    %11 = tpu.concatenate %0, %1 in 2 : vector<2x16x4xf32>, vector<2x16x32xf32> -> vector<2x16x36xf32>
    %12 = arith.truncf %11 : vector<2x16x36xf32> to vector<2x16x36xbf16>
    "tpu.trace_start"() <{level = 10 : i32, message = "bij,bjf->bif"}> : () -> ()
    %cst = arith.constant dense<0.000000e+00> : vector<2x16x36xf32>
    %13 = tpu.matmul %6, %12, %cst {dimension_numbers = #tpu.dot_dimension_numbers<[2], [1], [1], [2], [0, 0, 0, 1, 1, 2], [0], [0]>} : vector<2x16x16xbf16>, vector<2x16x36xbf16>, vector<2x16x36xf32> -> vector<2x16x36xf32>
    "tpu.trace_stop"() : () -> ()
    %14 = arith.truncf %13 : vector<2x16x36xf32> to vector<2x16x36xbf16>
    "tpu.trace_start"() <{level = 10 : i32, message = "bij,bjf->bif"}> : () -> ()
    %cst_8 = arith.constant dense<0.000000e+00> : vector<2x16x36xf32>
    %15 = tpu.matmul %6, %14, %cst_8 {dimension_numbers = #tpu.dot_dimension_numbers<[2], [1], [1], [2], [0, 0, 0, 1, 1, 2], [0], [0]>} : vector<2x16x16xbf16>, vector<2x16x36xbf16>, vector<2x16x36xf32> -> vector<2x16x36xf32>
    "tpu.trace_stop"() : () -> ()
    %cst_9 = arith.constant 2.000000e+00 : f32
    %16 = vector.broadcast %cst_9 : f32 to vector<2x16x36xf32>
    %17 = arith.mulf %16, %15 : vector<2x16x36xf32>
    %18 = arith.subf %17, %11 : vector<2x16x36xf32>
    %19 = arith.truncf %13 : vector<2x16x36xf32> to vector<2x16x36xbf16>
    "tpu.trace_start"() <{level = 10 : i32, message = "bij,bjf->bif"}> : () -> ()
    %cst_10 = arith.constant dense<0.000000e+00> : vector<2x16x36xf32>
    %20 = tpu.matmul %10, %19, %cst_10 {dimension_numbers = #tpu.dot_dimension_numbers<[2], [1], [1], [2], [0, 0, 0, 1, 1, 2], [0], [0]>} : vector<2x16x16xbf16>, vector<2x16x36xbf16>, vector<2x16x36xf32> -> vector<2x16x36xf32>
    "tpu.trace_stop"() : () -> ()
    %21 = arith.truncf %20 : vector<2x16x36xf32> to vector<2x16x36xbf16>
    "tpu.trace_start"() <{level = 10 : i32, message = "bij,bjf->bif"}> : () -> ()
    %cst_11 = arith.constant dense<0.000000e+00> : vector<2x16x36xf32>
    %22 = tpu.matmul %10, %21, %cst_11 {dimension_numbers = #tpu.dot_dimension_numbers<[2], [1], [1], [2], [0, 0, 0, 1, 1, 2], [0], [0]>} : vector<2x16x16xbf16>, vector<2x16x36xbf16>, vector<2x16x36xf32> -> vector<2x16x36xf32>
    "tpu.trace_stop"() : () -> ()
    %cst_12 = arith.constant 2.000000e+00 : f32
    %23 = vector.broadcast %cst_12 : f32 to vector<2x16x36xf32>
    %24 = arith.mulf %23, %22 : vector<2x16x36xf32>
    %25 = arith.subf %24, %13 : vector<2x16x36xf32>
    %26 = tpu.concatenate %11, %13, %18, %20, %25 in 2 : vector<2x16x36xf32>, vector<2x16x36xf32>, vector<2x16x36xf32>, vector<2x16x36xf32>, vector<2x16x36xf32> -> vector<2x16x180xf32>
    %27 = vector.shape_cast %26 : vector<2x16x180xf32> to vector<32x180xf32>
    %28 = arith.truncf %27 : vector<32x180xf32> to vector<32x180xbf16>
    %c0_13 = arith.constant 0 : index
    %c0_14 = arith.constant 0 : index
    %29 = vector.load %arg4[%c0_13, %c0_14] : memref<180x64xbf16, #tpu.memory_space<vmem>>, vector<180x64xbf16>
    %cst_15 = arith.constant dense<0.000000e+00> : vector<32x64xf32>
    %30 = tpu.matmul %28, %29, %cst_15 {dimension_numbers = #tpu.dot_dimension_numbers<[1], [0], [0], [1], [0, 0, 1, 1], [], []>} : vector<32x180xbf16>, vector<180x64xbf16>, vector<32x64xf32> -> vector<32x64xf32>
    %c0_16 = arith.constant 0 : index
    %c0_17 = arith.constant 0 : index
    %31 = vector.load %arg5[%c0_16, %c0_17] : memref<1x64xf32, #tpu.memory_space<vmem>>, vector<1x64xf32>
    %32 = vector.broadcast %31 : vector<1x64xf32> to vector<32x64xf32>
    %33 = arith.addf %30, %32 : vector<32x64xf32>
    %34 = vector.shape_cast %33 : vector<32x64xf32> to vector<2x16x64xf32>
    %35 = arith.negf %34 : vector<2x16x64xf32>
    %36 = math.exp %35 : vector<2x16x64xf32>
    %cst_18 = arith.constant 1.000000e+00 : f32
    %37 = vector.broadcast %cst_18 : f32 to vector<2x16x64xf32>
    %38 = arith.addf %37, %36 : vector<2x16x64xf32>
    %39 = arith.divf %37, %38 : vector<2x16x64xf32>
    %40 = vector.extract_strided_slice %39 {offsets = [0, 0, 0], sizes = [2, 16, 32], strides = [1, 1, 1]} : vector<2x16x64xf32> to vector<2x16x32xf32>
    %41 = vector.extract_strided_slice %39 {offsets = [0, 0, 32], sizes = [2, 16, 32], strides = [1, 1, 1]} : vector<2x16x64xf32> to vector<2x16x32xf32>
    %42 = arith.mulf %40, %1 : vector<2x16x32xf32>
    %43 = tpu.concatenate %0, %42 in 2 : vector<2x16x4xf32>, vector<2x16x32xf32> -> vector<2x16x36xf32>
    %44 = arith.truncf %43 : vector<2x16x36xf32> to vector<2x16x36xbf16>
    "tpu.trace_start"() <{level = 10 : i32, message = "bij,bjf->bif"}> : () -> ()
    %cst_19 = arith.constant dense<0.000000e+00> : vector<2x16x36xf32>
    %45 = tpu.matmul %6, %44, %cst_19 {dimension_numbers = #tpu.dot_dimension_numbers<[2], [1], [1], [2], [0, 0, 0, 1, 1, 2], [0], [0]>} : vector<2x16x16xbf16>, vector<2x16x36xbf16>, vector<2x16x36xf32> -> vector<2x16x36xf32>
    "tpu.trace_stop"() : () -> ()
    %46 = arith.truncf %45 : vector<2x16x36xf32> to vector<2x16x36xbf16>
    "tpu.trace_start"() <{level = 10 : i32, message = "bij,bjf->bif"}> : () -> ()
    %cst_20 = arith.constant dense<0.000000e+00> : vector<2x16x36xf32>
    %47 = tpu.matmul %6, %46, %cst_20 {dimension_numbers = #tpu.dot_dimension_numbers<[2], [1], [1], [2], [0, 0, 0, 1, 1, 2], [0], [0]>} : vector<2x16x16xbf16>, vector<2x16x36xbf16>, vector<2x16x36xf32> -> vector<2x16x36xf32>
    "tpu.trace_stop"() : () -> ()
    %cst_21 = arith.constant 2.000000e+00 : f32
    %48 = vector.broadcast %cst_21 : f32 to vector<2x16x36xf32>
    %49 = arith.mulf %48, %47 : vector<2x16x36xf32>
    %50 = arith.subf %49, %43 : vector<2x16x36xf32>
    %51 = arith.truncf %45 : vector<2x16x36xf32> to vector<2x16x36xbf16>
    "tpu.trace_start"() <{level = 10 : i32, message = "bij,bjf->bif"}> : () -> ()
    %cst_22 = arith.constant dense<0.000000e+00> : vector<2x16x36xf32>
    %52 = tpu.matmul %10, %51, %cst_22 {dimension_numbers = #tpu.dot_dimension_numbers<[2], [1], [1], [2], [0, 0, 0, 1, 1, 2], [0], [0]>} : vector<2x16x16xbf16>, vector<2x16x36xbf16>, vector<2x16x36xf32> -> vector<2x16x36xf32>
    "tpu.trace_stop"() : () -> ()
    %53 = arith.truncf %52 : vector<2x16x36xf32> to vector<2x16x36xbf16>
    "tpu.trace_start"() <{level = 10 : i32, message = "bij,bjf->bif"}> : () -> ()
    %cst_23 = arith.constant dense<0.000000e+00> : vector<2x16x36xf32>
    %54 = tpu.matmul %10, %53, %cst_23 {dimension_numbers = #tpu.dot_dimension_numbers<[2], [1], [1], [2], [0, 0, 0, 1, 1, 2], [0], [0]>} : vector<2x16x16xbf16>, vector<2x16x36xbf16>, vector<2x16x36xf32> -> vector<2x16x36xf32>
    "tpu.trace_stop"() : () -> ()
    %cst_24 = arith.constant 2.000000e+00 : f32
    %55 = vector.broadcast %cst_24 : f32 to vector<2x16x36xf32>
    %56 = arith.mulf %55, %54 : vector<2x16x36xf32>
    %57 = arith.subf %56, %45 : vector<2x16x36xf32>
    %58 = tpu.concatenate %43, %45, %50, %52, %57 in 2 : vector<2x16x36xf32>, vector<2x16x36xf32>, vector<2x16x36xf32>, vector<2x16x36xf32>, vector<2x16x36xf32> -> vector<2x16x180xf32>
    %59 = vector.shape_cast %58 : vector<2x16x180xf32> to vector<32x180xf32>
    %60 = arith.truncf %59 : vector<32x180xf32> to vector<32x180xbf16>
    %c0_25 = arith.constant 0 : index
    %c0_26 = arith.constant 0 : index
    %61 = vector.load %arg6[%c0_25, %c0_26] : memref<180x32xbf16, #tpu.memory_space<vmem>>, vector<180x32xbf16>
    %cst_27 = arith.constant dense<0.000000e+00> : vector<32x32xf32>
    %62 = tpu.matmul %60, %61, %cst_27 {dimension_numbers = #tpu.dot_dimension_numbers<[1], [0], [0], [1], [0, 0, 1, 1], [], []>} : vector<32x180xbf16>, vector<180x32xbf16>, vector<32x32xf32> -> vector<32x32xf32>
    %c0_28 = arith.constant 0 : index
    %c0_29 = arith.constant 0 : index
    %63 = vector.load %arg7[%c0_28, %c0_29] : memref<1x32xf32, #tpu.memory_space<vmem>>, vector<1x32xf32>
    %64 = vector.broadcast %63 : vector<1x32xf32> to vector<32x32xf32>
    %65 = arith.addf %62, %64 : vector<32x32xf32>
    %66 = vector.shape_cast %65 : vector<32x32xf32> to vector<2x16x32xf32>
    %67 = math.tanh %66 : vector<2x16x32xf32>
    %68 = arith.mulf %41, %1 : vector<2x16x32xf32>
    %cst_30 = arith.constant 1.000000e+00 : f32
    %69 = vector.broadcast %cst_30 : f32 to vector<2x16x32xf32>
    %70 = arith.subf %69, %41 : vector<2x16x32xf32>
    %71 = arith.mulf %70, %67 : vector<2x16x32xf32>
    %72 = arith.addf %68, %71 : vector<2x16x32xf32>
    %c0_31 = arith.constant 0 : index
    %c0_32 = arith.constant 0 : index
    %c0_33 = arith.constant 0 : index
    %73 = vector.load %arg10[%c0_31, %c0_32, %c0_33] : memref<2x16x32xf32, #tpu.memory_space<vmem>>, vector<2x16x32xf32>
    tpu.vector_store %arg10[%c0_31, %c0_32, %c0_33], %72 {strides = array<i32>} : memref<2x16x32xf32, #tpu.memory_space<vmem>>, vector<2x16x32xf32>,
    %c0_34 = arith.constant 0 : index
    %c0_35 = arith.constant 0 : index
    %74 = vector.load %arg8[%c0_34, %c0_35] : memref<1x32xf32, #tpu.memory_space<vmem>>, vector<1x32xf32>
    %75 = vector.shape_cast %74 : vector<1x32xf32> to vector<1x1x32xf32>
    %76 = vector.broadcast %75 : vector<1x1x32xf32> to vector<2x16x32xf32>
    %77 = arith.mulf %72, %76 : vector<2x16x32xf32>
    %cst_36 = arith.constant dense<0.000000e+00> : vector<2x16xf32>
    %78 = vector.multi_reduction <add>, %77, %cst_36 [2] : vector<2x16x32xf32> to vector<2x16xf32>
    %79 = vector.shape_cast %78 : vector<2x16xf32> to vector<2x16x1xf32>
    %c0_37 = arith.constant 0 : index
    %c0_38 = arith.constant 0 : index
    %80 = vector.load %arg9[%c0_37, %c0_38] : memref<1x1xf32, #tpu.memory_space<vmem>>, vector<1x1xf32>
    %81 = vector.shape_cast %80 : vector<1x1xf32> to vector<1x1x1xf32>
    %82 = vector.broadcast %81 : vector<1x1x1xf32> to vector<2x16x1xf32>
    %83 = arith.addf %79, %82 : vector<2x16x1xf32>
    %c0_39 = arith.constant 0 : index
    %c0_40 = arith.constant 0 : index
    %c0_41 = arith.constant 0 : index
    %84 = vector.load %arg11[%c0_39, %c0_40, %c0_41] : memref<2x16x1xf32, #tpu.memory_space<vmem>>, vector<2x16x1xf32>
    tpu.vector_store %arg11[%c0_39, %c0_40, %c0_41], %83 {strides = array<i32>} : memref<2x16x1xf32, #tpu.memory_space<vmem>>, vector<2x16x1xf32>,
    return
  }
  func.func @transform_0(%arg0: i32) -> (i32, i32, i32) {
    %c0_i32 = arith.constant 0 : i32
    %c0_i32_0 = arith.constant 0 : i32
    %c0_i32_1 = arith.constant 0 : i32
    return %arg0, %c0_i32, %c0_i32_0 : i32, i32, i32
  }
  func.func @transform_1(%arg0: i32) -> (i32, i32, i32) {
    %c0_i32 = arith.constant 0 : i32
    %c0_i32_0 = arith.constant 0 : i32
    %c0_i32_1 = arith.constant 0 : i32
    return %arg0, %c0_i32, %c0_i32_0 : i32, i32, i32
  }
  func.func @transform_2(%arg0: i32) -> (i32, i32, i32) {
    %c0_i32 = arith.constant 0 : i32
    %c0_i32_0 = arith.constant 0 : i32
    %c0_i32_1 = arith.constant 0 : i32
    %c0_i32_2 = arith.constant 0 : i32
    return %c0_i32, %c0_i32_0, %c0_i32_1 : i32, i32, i32
  }
  func.func @transform_3(%arg0: i32) -> (i32, i32) {
    %c0_i32 = arith.constant 0 : i32
    %c0_i32_0 = arith.constant 0 : i32
    %c0_i32_1 = arith.constant 0 : i32
    return %c0_i32, %c0_i32_0 : i32, i32
  }
  func.func @transform_4(%arg0: i32) -> (i32, i32) {
    %c0_i32 = arith.constant 0 : i32
    %c0_i32_0 = arith.constant 0 : i32
    %c0_i32_1 = arith.constant 0 : i32
    return %c0_i32, %c0_i32_0 : i32, i32
  }
  func.func @transform_5(%arg0: i32) -> (i32, i32) {
    %c0_i32 = arith.constant 0 : i32
    %c0_i32_0 = arith.constant 0 : i32
    %c0_i32_1 = arith.constant 0 : i32
    return %c0_i32, %c0_i32_0 : i32, i32
  }
  func.func @transform_6(%arg0: i32) -> (i32, i32) {
    %c0_i32 = arith.constant 0 : i32
    %c0_i32_0 = arith.constant 0 : i32
    %c0_i32_1 = arith.constant 0 : i32
    return %c0_i32, %c0_i32_0 : i32, i32
  }
  func.func @transform_7(%arg0: i32) -> (i32, i32) {
    %c0_i32 = arith.constant 0 : i32
    %c0_i32_0 = arith.constant 0 : i32
    %c0_i32_1 = arith.constant 0 : i32
    return %c0_i32, %c0_i32_0 : i32, i32
  }
  func.func @transform_8(%arg0: i32) -> (i32, i32) {
    %c0_i32 = arith.constant 0 : i32
    %c0_i32_0 = arith.constant 0 : i32
    %c0_i32_1 = arith.constant 0 : i32
    return %c0_i32, %c0_i32_0 : i32, i32
  }
  func.func @transform_9(%arg0: i32) -> (i32, i32, i32) {
    %c0_i32 = arith.constant 0 : i32
    %c0_i32_0 = arith.constant 0 : i32
    %c0_i32_1 = arith.constant 0 : i32
    return %arg0, %c0_i32, %c0_i32_0 : i32, i32, i32
  }
  func.func @transform_10(%arg0: i32) -> (i32, i32, i32) {
    %c0_i32 = arith.constant 0 : i32
    %c0_i32_0 = arith.constant 0 : i32
    %c0_i32_1 = arith.constant 0 : i32
    return %arg0, %c0_i32, %c0_i32_0 : i32, i32, i32
  }
}

</mosaic_0001>

<llo_original>
// kernel: tpu_custom_call.1
$region0: #{tpu_custom_call.1}
  #allocation0 [shape = 'u32[]', space=smem, size = 0x4, offset = 0x4, fixed_abs, tag = 'smem constant byte address 0x4 - core index']
  #allocation1 [shape = 'u32[72,128]{1,0:T(1,128)}', space=vmem, size = 0x9000, scoped, tag = 'internal scratch']
  #allocation2 [shape = 'f32[1,1]{1,0:T(1,128)S(1)}', space=vmem, size = 0x200, scoped, tag = 'scoped memory for tpu_custom_call.1']
  %s0 = inlined_call_operand.vmem [shape: f32[2,16,4], index: 0, kind: input, shape index: {}]
  %s1 = inlined_call_operand.vmem [shape: f32[2,16,32], index: 1, kind: input, shape index: {}]
  %s2 = inlined_call_operand.vmem [shape: bf16[2,16,16], index: 2, kind: input, shape index: {}]
  %s3 = inlined_call_operand.vmem [shape: bf16[180,64], index: 3, kind: input, shape index: {}]
  %s4 = inlined_call_operand.vmem [shape: f32[1,64], index: 4, kind: input, shape index: {}]
  %s5 = inlined_call_operand.vmem [shape: bf16[180,32], index: 5, kind: input, shape index: {}]
  %s6 = inlined_call_operand.vmem [shape: f32[1,32], index: 6, kind: input, shape index: {}]
  %s7 = inlined_call_operand.vmem [shape: f32[1,32], index: 7, kind: input, shape index: {}]
  %s8 = inlined_call_operand.<no memory space> [shape: f32[1,1], index: 8, kind: input, shape index: {}]
  %s9 = inlined_call_operand.hbm [shape: f32[2,16,32], index: 9, kind: output, shape index: {0}]
  %s10 = inlined_call_operand.vmem [shape: f32[2,16,1], index: 10, kind: output, shape index: {1}]
  %11 = xla_tuple %s9, %s10
  %s12 = sld [smem:[#allocation0]]
  $region54: #{tpu_custom_call.1} parent=0
    _
  %s14 = ssub.s32 1, %s12
  %s15 = scalar_select 0, %s14, %s12
  %v16 = vstv %s8
  %17 = vst [vmem:[#allocation2] sm:$0x1] %v16
  $region1: #{tpu_custom_call.1} parent=0
    #allocation3 [shape = 'u8[16384]{0}', space=vmem, size = 0x4000, scoped, tag = 'output window, operand 0, single buffered']
    #allocation4 [shape = 's32[1]{0}', space=sflag, size = 0x4, scoped, tag = 'scoped memory for tpu_custom_call.1']
    %18 = vsyncpa [#allocation4], 0
    // Predicated region
    $region2: #{tpu_custom_call.1} parent=1 // pred_check
      _
    $region3: #{tpu_custom_call.1} parent=1 // pred_check_branch
      %20 = sbr.rel (0) target = $region5
    $region4: #{tpu_custom_call.1} parent=1 // pred_region
      _
    $region5: #{tpu_custom_call.1} parent=1 // pred_fallthru
      _
    // Predicated region
    $region6: #{tpu_custom_call.1} parent=1 // pred_check
      _
    $region7: #{tpu_custom_call.1} parent=1 // pred_check_branch
      %22 = sbr.rel (0) target = $region9
    $region8: #{tpu_custom_call.1} parent=1 // pred_region
      _
    $region9: #{tpu_custom_call.1} parent=1 // pred_fallthru
      _
    // Predicated region
    $region10: #{tpu_custom_call.1} parent=1 // pred_check
      _
    $region11: #{tpu_custom_call.1} parent=1 // pred_check_branch
      %24 = sbr.rel (0) target = $region13
    $region12: #{tpu_custom_call.1} parent=1 // pred_region
      _
    $region13: #{tpu_custom_call.1} parent=1 // pred_fallthru
      _
    // Predicated region
    $region14: #{tpu_custom_call.1} parent=1 // pred_check
      _
    $region15: #{tpu_custom_call.1} parent=1 // pred_check_branch
      %26 = sbr.rel (0) target = $region17
    $region16: #{tpu_custom_call.1} parent=1 // pred_region
      _
    $region17: #{tpu_custom_call.1} parent=1 // pred_fallthru
      _
    // Predicated region
    $region18: #{tpu_custom_call.1} parent=1 // pred_check
      _
    $region19: #{tpu_custom_call.1} parent=1 // pred_check_branch
      %28 = sbr.rel (0) target = $region21
    $region20: #{tpu_custom_call.1} parent=1 // pred_region
      _
    $region21: #{tpu_custom_call.1} parent=1 // pred_fallthru
      _
    // Predicated region
    $region22: #{tpu_custom_call.1} parent=1 // pred_check
      _
    $region23: #{tpu_custom_call.1} parent=1 // pred_check_branch
      %30 = sbr.rel (0) target = $region25
    $region24: #{tpu_custom_call.1} parent=1 // pred_region
      _
    $region25: #{tpu_custom_call.1} parent=1 // pred_fallthru
      _
    // Predicated region
    $region26: #{tpu_custom_call.1} parent=1 // pred_check
      _
    $region27: #{tpu_custom_call.1} parent=1 // pred_check_branch
      %32 = sbr.rel (0) target = $region29
    $region28: #{tpu_custom_call.1} parent=1 // pred_region
      _
    $region29: #{tpu_custom_call.1} parent=1 // pred_fallthru
      _
    // Predicated region
    $region30: #{tpu_custom_call.1} parent=1 // pred_check
      _
    $region31: #{tpu_custom_call.1} parent=1 // pred_check_branch
      %34 = sbr.rel (0) target = $region33
    $region32: #{tpu_custom_call.1} parent=1 // pred_region
      _
    $region33: #{tpu_custom_call.1} parent=1 // pred_fallthru
      _
    // Predicated region
    $region34: #{tpu_custom_call.1} parent=1 // pred_check
      _
    $region35: #{tpu_custom_call.1} parent=1 // pred_check_branch
      %36 = sbr.rel (0) target = $region37
    $region36: #{tpu_custom_call.1} parent=1 // pred_region
      _
    $region37: #{tpu_custom_call.1} parent=1 // pred_fallthru
      _
    %v38 = vld [vmem:[%s0] sm:$0xff]
    %v39 = vld [vmem:[%s0 + $0x8] sm:$0xff]
    %v40 = vld [vmem:[%s0 + $0x10] sm:$0xff]
    %v41 = vld [vmem:[%s0 + $0x18] sm:$0xff]
    %v42 = vld [vmem:[%s1] sm:$0xff]
    %v43 = vld [vmem:[%s1 + $0x8] sm:$0xff]
    %v44 = vld [vmem:[%s1 + $0x10] sm:$0xff]
    %v45 = vld [vmem:[%s1 + $0x18] sm:$0xff]
    %v46 = vld [vmem:[%s2] sm:$0xf]
    %v47 = vld [vmem:[%s2 + $0x4] sm:$0xf]
    %v48 = vld [vmem:[%s2 + $0x8] sm:$0xf]
    %v49 = vld [vmem:[%s2 + $0xc] sm:$0xf]
    %54 = vrot.lane.b32.xlu0 %v42, 4
    %v55 = vpop.permute.xlu0 %54
    %56 = vrot.lane.b32.xlu0 %v43, 4
    %v57 = vpop.permute.xlu0 %56
    %58 = vrot.lane.b32.xlu0 %v44, 4
    %v59 = vpop.permute.xlu0 %58
    %60 = vrot.lane.b32.xlu0 %v45, 4
    %v61 = vpop.permute.xlu0 %60
    %vm66 = vcmask 31744
    %v67 = vsel %vm66, %v38, %v55
    %v68 = vsel %vm66, %v39, %v57
    %v69 = vsel %vm66, %v40, %v59
    %v70 = vsel %vm66, %v41, %v61
    %v71 = vpack.c.bf16 %v67, %v67
    %v72 = vpack.c.bf16 %v68, %v68
    %v73 = vpack.c.bf16 %v69, %v69
    %v74 = vpack.c.bf16 %v70, %v70
    %v77 = vunpack.c.l.b16 %v46
    %v78 = vunpack.c.l.b16 %v47
    %v79 = vpack.c.b16 %v78, %v77
    %v82 = vunpack.c.l.b16 %v71
    %v83 = vunpack.c.l.b16 %v72
    %v84 = vpack.c.b16 %v83, %v82
    %vm86 = vcmask 130048
    %v88 = vsel %vm86, %v79, 0
    %90 = vmatpush.bf16.msra.mxu0 0
    %91 = vmatpush.bf16.msra.mxu0 0
    %92 = vmatpush.bf16.msra.mxu0 0
    %93 = vmatpush.bf16.msra.mxu0 0
    %94 = vmatpush.bf16.msra.mxu0 0
    %95 = vmatpush.bf16.msra.mxu0 0
    %96 = vmatpush.bf16.msra.mxu0 0
    %97 = vmatpush.bf16.msra.mxu0 %v84
    %98 = vmatmul.bf16.gmra.mxu0 %v88
    %v99 = vpop.f32.mrf.mxu0
    %v100 = vadd.f32 0.0, %v99
    %v101 = vpop.f32.mrf.mxu0
    %v102 = vadd.f32 0.0, %v101
    %103 = vdwg.mxu0
    %v106 = vunpack.c.l.b16 %v73
    %v107 = vunpack.c.l.b16 %v74
    %v108 = vpack.c.b16 %v107, %v106
    %110 = vmatpush.bf16.msra.mxu0 0
    %111 = vmatpush.bf16.msra.mxu0 0
    %112 = vmatpush.bf16.msra.mxu0 0
    %113 = vmatpush.bf16.msra.mxu0 0
    %114 = vmatpush.bf16.msra.mxu0 0
    %115 = vmatpush.bf16.msra.mxu0 0
    %116 = vmatpush.bf16.msra.mxu0 0
    %117 = vmatpush.bf16.msra.mxu0 %v108
    %118 = vmatmul.bf16.gmra.mxu0 %v88
    %v119 = vpop.f32.mrf.mxu0
    %v120 = vadd.f32 0.0, %v119
    %v121 = vpop.f32.mrf.mxu0
    %v122 = vadd.f32 0.0, %v121
    %123 = vdwg.mxu0
    %v124 = vpack.c.bf16 %v100, %v100
    %v125 = vpack.c.bf16 %v102, %v102
    %v126 = vpack.c.bf16 %v120, %v120
    %v127 = vpack.c.bf16 %v122, %v122
    %v130 = vunpack.c.l.b16 %v124
    %v131 = vunpack.c.l.b16 %v125
    %v132 = vpack.c.b16 %v131, %v130
    %134 = vmatpush.bf16.msra.mxu0 0
    %135 = vmatpush.bf16.msra.mxu0 0
    %136 = vmatpush.bf16.msra.mxu0 0
    %137 = vmatpush.bf16.msra.mxu0 0
    %138 = vmatpush.bf16.msra.mxu0 0
    %139 = vmatpush.bf16.msra.mxu0 0
    %140 = vmatpush.bf16.msra.mxu0 0
    %141 = vmatpush.bf16.msra.mxu0 %v132
    %142 = vmatmul.bf16.gmra.mxu0 %v88
    %v143 = vpop.f32.mrf.mxu0
    %v144 = vadd.f32 0.0, %v143
    %v145 = vpop.f32.mrf.mxu0
    %v146 = vadd.f32 0.0, %v145
    %147 = vdwg.mxu0
    %v150 = vunpack.c.l.b16 %v126
    %v151 = vunpack.c.l.b16 %v127
    %v152 = vpack.c.b16 %v151, %v150
    %154 = vmatpush.bf16.msra.mxu0 0
    %155 = vmatpush.bf16.msra.mxu0 0
    %156 = vmatpush.bf16.msra.mxu0 0
    %157 = vmatpush.bf16.msra.mxu0 0
    %158 = vmatpush.bf16.msra.mxu0 0
    %159 = vmatpush.bf16.msra.mxu0 0
    %160 = vmatpush.bf16.msra.mxu0 0
    %161 = vmatpush.bf16.msra.mxu0 %v152
    %162 = vmatmul.bf16.gmra.mxu0 %v88
    %v163 = vpop.f32.mrf.mxu0
    %v164 = vadd.f32 0.0, %v163
    %v165 = vpop.f32.mrf.mxu0
    %v166 = vadd.f32 0.0, %v165
    %167 = vdwg.mxu0
    %v168 = vmul.f32 %v144, 2.0
    %v169 = vmul.f32 %v146, 2.0
    %v170 = vmul.f32 %v164, 2.0
    %v171 = vmul.f32 %v166, 2.0
    %v172 = vsub.f32 %v168, %v67
    %v173 = vsub.f32 %v169, %v68
    %v174 = vsub.f32 %v170, %v69
    %v175 = vsub.f32 %v171, %v70
    %v178 = vunpack.c.l.b16 %v48
    %v179 = vunpack.c.l.b16 %v49
    %v180 = vpack.c.b16 %v179, %v178
    %v182 = vsel %vm86, %v180, 0
    %184 = vmatpush.bf16.msra.mxu0 0
    %185 = vmatpush.bf16.msra.mxu0 0
    %186 = vmatpush.bf16.msra.mxu0 0
    %187 = vmatpush.bf16.msra.mxu0 0
    %188 = vmatpush.bf16.msra.mxu0 0
    %189 = vmatpush.bf16.msra.mxu0 0
    %190 = vmatpush.bf16.msra.mxu0 0
    %191 = vmatpush.bf16.msra.mxu0 %v132
    %192 = vmatmul.bf16.gmra.mxu0 %v182
    %v193 = vpop.f32.mrf.mxu0
    %v194 = vadd.f32 0.0, %v193
    %v195 = vpop.f32.mrf.mxu0
    %v196 = vadd.f32 0.0, %v195
    %197 = vdwg.mxu0
    %198 = vmatpush.bf16.msra.mxu0 0
    %199 = vmatpush.bf16.msra.mxu0 0
    %200 = vmatpush.bf16.msra.mxu0 0
    %201 = vmatpush.bf16.msra.mxu0 0
    %202 = vmatpush.bf16.msra.mxu0 0
    %203 = vmatpush.bf16.msra.mxu0 0
    %204 = vmatpush.bf16.msra.mxu0 0
    %205 = vmatpush.bf16.msra.mxu0 %v152
    %206 = vmatmul.bf16.gmra.mxu0 %v182
    %v207 = vpop.f32.mrf.mxu0
    %v208 = vadd.f32 0.0, %v207
    %v209 = vpop.f32.mrf.mxu0
    %v210 = vadd.f32 0.0, %v209
    %211 = vdwg.mxu0
    %v212 = vpack.c.bf16 %v194, %v194
    %v213 = vpack.c.bf16 %v196, %v196
    %v214 = vpack.c.bf16 %v208, %v208
    %v215 = vpack.c.bf16 %v210, %v210
    %v218 = vunpack.c.l.b16 %v212
    %v219 = vunpack.c.l.b16 %v213
    %v220 = vpack.c.b16 %v219, %v218
    %222 = vmatpush.bf16.msra.mxu0 0
    %223 = vmatpush.bf16.msra.mxu0 0
    %224 = vmatpush.bf16.msra.mxu0 0
    %225 = vmatpush.bf16.msra.mxu0 0
    %226 = vmatpush.bf16.msra.mxu0 0
    %227 = vmatpush.bf16.msra.mxu0 0
    %228 = vmatpush.bf16.msra.mxu0 0
    %229 = vmatpush.bf16.msra.mxu0 %v220
    %230 = vmatmul.bf16.gmra.mxu0 %v182
    %v231 = vpop.f32.mrf.mxu0
    %v232 = vadd.f32 0.0, %v231
    %v233 = vpop.f32.mrf.mxu0
    %v234 = vadd.f32 0.0, %v233
    %235 = vdwg.mxu0
    %v238 = vunpack.c.l.b16 %v214
    %v239 = vunpack.c.l.b16 %v215
    %v240 = vpack.c.b16 %v239, %v238
    %242 = vmatpush.bf16.msra.mxu0 0
    %243 = vmatpush.bf16.msra.mxu0 0
    %244 = vmatpush.bf16.msra.mxu0 0
    %245 = vmatpush.bf16.msra.mxu0 0
    %246 = vmatpush.bf16.msra.mxu0 0
    %247 = vmatpush.bf16.msra.mxu0 0
    %248 = vmatpush.bf16.msra.mxu0 0
    %249 = vmatpush.bf16.msra.mxu0 %v240
    %250 = vmatmul.bf16.gmra.mxu0 %v182
    %v251 = vpop.f32.mrf.mxu0
    %v252 = vadd.f32 0.0, %v251
    %v253 = vpop.f32.mrf.mxu0
    %v254 = vadd.f32 0.0, %v253
    %255 = vdwg.mxu0
    %v256 = vmul.f32 %v232, 2.0
    %v257 = vmul.f32 %v234, 2.0
    %v258 = vmul.f32 %v252, 2.0
    %v259 = vmul.f32 %v254, 2.0
    %v260 = vsub.f32 %v256, %v100
    %v261 = vsub.f32 %v257, %v102
    %v262 = vsub.f32 %v258, %v120
    %v263 = vsub.f32 %v259, %v122
    %268 = vrot.lane.b32.xlu0 %v100, 36
    %v269 = vpop.permute.xlu0 %268
    %270 = vrot.lane.b32.xlu0 %v102, 36
    %v271 = vpop.permute.xlu0 %270
    %272 = vrot.lane.b32.xlu0 %v120, 36
    %v273 = vpop.permute.xlu0 %272
    %274 = vrot.lane.b32.xlu0 %v122, 36
    %v275 = vpop.permute.xlu0 %274
    %284 = vrot.lane.b32.xlu0 %v172, 72
    %v285 = vpop.permute.xlu0 %284
    %286 = vrot.lane.b32.xlu0 %v173, 72
    %v287 = vpop.permute.xlu0 %286
    %288 = vrot.lane.b32.xlu0 %v174, 72
    %v289 = vpop.permute.xlu0 %288
    %290 = vrot.lane.b32.xlu0 %v175, 72
    %v291 = vpop.permute.xlu0 %290
    %300 = vrot.lane.b32.xlu0 %v194, 108
    %v301 = vpop.permute.xlu0 %300
    %302 = vrot.lane.b32.xlu0 %v196, 108
    %v303 = vpop.permute.xlu0 %302
    %304 = vrot.lane.b32.xlu0 %v208, 108
    %v305 = vpop.permute.xlu0 %304
    %306 = vrot.lane.b32.xlu0 %v210, 108
    %v307 = vpop.permute.xlu0 %306
    %316 = vrot.lane.b32.xlu0 %v260, 16
    %v317 = vpop.permute.xlu0 %316
    %318 = vrot.lane.b32.xlu0 %v261, 16
    %v319 = vpop.permute.xlu0 %318
    %320 = vrot.lane.b32.xlu0 %v262, 16
    %v321 = vpop.permute.xlu0 %320
    %322 = vrot.lane.b32.xlu0 %v263, 16
    %v323 = vpop.permute.xlu0 %322
    %vm328 = vcmask 293888
    %v329 = vsel %vm328, %v67, %v269
    %v330 = vsel %vm328, %v68, %v271
    %v331 = vsel %vm328, %v69, %v273
    %v332 = vsel %vm328, %v70, %v275
    %vm333 = vcmask 588800
    %v334 = vsel %vm333, %v329, %v285
    %v335 = vsel %vm333, %v330, %v287
    %v336 = vsel %vm333, %v331, %v289
    %v337 = vsel %vm333, %v332, %v291
    %vm338 = vcmask 883712
    %v339 = vsel %vm338, %v334, %v301
    %v340 = vsel %vm338, %v335, %v303
    %v341 = vsel %vm338, %v336, %v305
    %v342 = vsel %vm338, %v337, %v307
    %v343 = vsel %vm86, %v301, %v317
    %v344 = vsel %vm86, %v303, %v319
    %v345 = vsel %vm86, %v305, %v321
    %v346 = vsel %vm86, %v307, %v323
    %v347 = vpack.c.bf16 %v340, %v339
    %v348 = vpack.c.bf16 %v344, %v343
    %v349 = vpack.c.bf16 %v342, %v341
    %v350 = vpack.c.bf16 %v346, %v345
    %v351 = vld [vmem:[%s3] sm:$0xf]
    %v352 = vld [vmem:[%s3 + $0x4] sm:$0xf]
    %v353 = vld [vmem:[%s3 + $0x8] sm:$0xf]
    %v354 = vld [vmem:[%s3 + $0xc] sm:$0xf]
    %v355 = vld [vmem:[%s3 + $0x10] sm:$0xf]
    %v356 = vld [vmem:[%s3 + $0x14] sm:$0xf]
    %v357 = vld [vmem:[%s3 + $0x18] sm:$0xf]
    %v358 = vld [vmem:[%s3 + $0x1c] sm:$0xf]
    %v359 = vld [vmem:[%s3 + $0x20] sm:$0xf]
    %v360 = vld [vmem:[%s3 + $0x24] sm:$0xf]
    %v361 = vld [vmem:[%s3 + $0x28] sm:$0xf]
    %v362 = vld [vmem:[%s3 + $0x2c] sm:$0xf]
    %v363 = vld [vmem:[%s3 + $0x30] sm:$0xf]
    %v364 = vld [vmem:[%s3 + $0x34] sm:$0xf]
    %v365 = vld [vmem:[%s3 + $0x38] sm:$0xf]
    %v366 = vld [vmem:[%s3 + $0x3c] sm:$0xf]
    %v367 = vld [vmem:[%s3 + $0x40] sm:$0xf]
    %v368 = vld [vmem:[%s3 + $0x44] sm:$0xf]
    %v369 = vld [vmem:[%s3 + $0x48] sm:$0xf]
    %v370 = vld [vmem:[%s3 + $0x4c] sm:$0xf]
    %v371 = vld [vmem:[%s3 + $0x50] sm:$0xf]
    %v372 = vld [vmem:[%s3 + $0x54] sm:$0xf]
    %v373 = vld [vmem:[%s3 + $0x58] sm:$0x3]
    %v374 = vld [vmem:[%s4] sm:$0x1]
    %v376 = vperm.slane %v374, 0
    %v401 = vunpack.c.l.b16 %v351
    %v402 = vunpack.c.l.b16 %v352
    %v403 = vunpack.c.l.b16 %v353
    %v404 = vunpack.c.l.b16 %v354
    %v405 = vunpack.c.l.b16 %v355
    %v406 = vunpack.c.l.b16 %v356
    %v407 = vunpack.c.l.b16 %v357
    %v408 = vunpack.c.l.b16 %v358
    %v409 = vunpack.c.l.b16 %v359
    %v410 = vunpack.c.l.b16 %v360
    %v411 = vunpack.c.l.b16 %v361
    %v412 = vunpack.c.l.b16 %v362
    %v413 = vunpack.c.l.b16 %v363
    %v414 = vunpack.c.l.b16 %v364
    %v415 = vunpack.c.l.b16 %v365
    %v416 = vunpack.c.l.b16 %v366
    %v417 = vunpack.c.l.b16 %v367
    %v418 = vunpack.c.l.b16 %v368
    %v419 = vunpack.c.l.b16 %v369
    %v420 = vunpack.c.l.b16 %v370
    %v421 = vunpack.c.l.b16 %v371
    %v422 = vunpack.c.l.b16 %v372
    %v423 = vunpack.c.l.b16 %v373
    %v424 = vpack.c.b16 %v402, %v401
    %v425 = vpack.c.b16 %v404, %v403
    %v426 = vpack.c.b16 %v406, %v405
    %v427 = vpack.c.b16 %v408, %v407
    %v428 = vpack.c.b16 %v410, %v409
    %v429 = vpack.c.b16 %v412, %v411
    %v430 = vpack.c.b16 %v414, %v413
    %v431 = vpack.c.b16 %v416, %v415
    %v432 = vpack.c.b16 %v418, %v417
    %v433 = vpack.c.b16 %v420, %v419
    %v434 = vpack.c.b16 %v422, %v421
    %v435 = vpack.c.b16 %v423, %v423
    %vm447 = vcmask 424960
    %v449 = vsel %vm447, %v348, 0
    %v452 = vsel %vm447, %v350, 0
    %vm454 = vcmask 1041408
    %v456 = vsel %vm454, %v435, 0
    %458 = vmatpush.bf16.msra.mxu0 %v431
    %459 = vmatpush.bf16.msra.mxu0 %v430
    %460 = vmatpush.bf16.msra.mxu0 %v429
    %461 = vmatpush.bf16.msra.mxu0 %v428
    %462 = vmatpush.bf16.msra.mxu0 %v427
    %463 = vmatpush.bf16.msra.mxu0 %v426
    %464 = vmatpush.bf16.msra.mxu0 %v425
    %465 = vmatpush.bf16.msra.mxu0 %v424
    %466 = vmatmul.bf16.gmra.mxu0 %v347
    %v467 = vpop.f32.mrf.mxu0
    %v468 = vadd.f32 %v376, %v467
    %v469 = vpop.f32.mrf.mxu0
    %v470 = vadd.f32 %v376, %v469
    %471 = vmatmul.bf16.gmra.mxu0 %v349
    %v472 = vpop.f32.mrf.mxu0
    %v473 = vadd.f32 %v376, %v472
    %v474 = vpop.f32.mrf.mxu0
    %v475 = vadd.f32 %v376, %v474
    %476 = vdwg.mxu0
    %477 = vmatpush.bf16.msra.mxu0 0
    %478 = vmatpush.bf16.msra.mxu0 0
    %479 = vmatpush.bf16.msra.mxu0 0
    %480 = vmatpush.bf16.msra.mxu0 0
    %481 = vmatpush.bf16.msra.mxu0 %v456
    %482 = vmatpush.bf16.msra.mxu0 %v434
    %483 = vmatpush.bf16.msra.mxu0 %v433
    %484 = vmatpush.bf16.msra.mxu0 %v432
    %485 = vmatmul.bf16.gmra.mxu0 %v449
    %v486 = vpop.f32.mrf.mxu0
    %v487 = vadd.f32 %v468, %v486
    %v488 = vpop.f32.mrf.mxu0
    %v489 = vadd.f32 %v470, %v488
    %490 = vmatmul.bf16.gmra.mxu0 %v452
    %v491 = vpop.f32.mrf.mxu0
    %v492 = vadd.f32 %v473, %v491
    %v493 = vpop.f32.mrf.mxu0
    %v494 = vadd.f32 %v475, %v493
    %495 = vdwg.mxu0
    %v496 = vxor.u32 %v487, 2147483648
    %v497 = vxor.u32 %v489, 2147483648
    %v498 = vxor.u32 %v492, 2147483648
    %v499 = vxor.u32 %v494, 2147483648
    %v500 = vmul.f32 %v496, 1.442695
    %v501 = vpow.pop %v500
    %v502 = vmul.f32 %v497, 1.442695
    %v503 = vpow.pop %v502
    %v504 = vmul.f32 %v498, 1.442695
    %v505 = vpow.pop %v504
    %v506 = vmul.f32 %v499, 1.442695
    %v507 = vpow.pop %v506
    %v508 = vadd.f32 %v501, 1.0
    %v509 = vadd.f32 %v503, 1.0
    %v510 = vadd.f32 %v505, 1.0
    %v511 = vadd.f32 %v507, 1.0
    %v512 = vrcp.pop %v508
    %v513 = vmul.f32 %v508, %v512
    %v514 = vsub.f32 1.0, %v513
    %v515 = vmul.f32 %v512, %v514
    %v516 = vadd.f32 %v512, %v515
    %vm517 = vweird.f32 %v508
    %vm518 = vweird.f32 %v512
    %vm519 = vmor %vm517, %vm518
    %v520 = vsel %vm519, %v512, %v516
    %v521 = vand.u32 2147483647, %v508
    %vm522 = vcmp.eq.f32.partialorder %v521, 8.507059e+37
    %v523 = vand.u32 %v508, 2147483648
    %v524 = vor.u32 1.1754944e-38, %v523
    %v525 = vsel %vm522, %v524, %v520
    %v526 = vmul.f32 1.0, %v525
    %v527 = vrcp.pop %v509
    %v528 = vmul.f32 %v509, %v527
    %v529 = vsub.f32 1.0, %v528
    %v530 = vmul.f32 %v527, %v529
    %v531 = vadd.f32 %v527, %v530
    %vm532 = vweird.f32 %v509
    %vm533 = vweird.f32 %v527
    %vm534 = vmor %vm532, %vm533
    %v535 = vsel %vm534, %v527, %v531
    %v536 = vand.u32 2147483647, %v509
    %vm537 = vcmp.eq.f32.partialorder %v536, 8.507059e+37
    %v538 = vand.u32 %v509, 2147483648
    %v539 = vor.u32 1.1754944e-38, %v538
    %v540 = vsel %vm537, %v539, %v535
    %v541 = vmul.f32 1.0, %v540
    %v542 = vrcp.pop %v510
    %v543 = vmul.f32 %v510, %v542
    %v544 = vsub.f32 1.0, %v543
    %v545 = vmul.f32 %v542, %v544
    %v546 = vadd.f32 %v542, %v545
    %vm547 = vweird.f32 %v510
    %vm548 = vweird.f32 %v542
    %vm549 = vmor %vm547, %vm548
    %v550 = vsel %vm549, %v542, %v546
    %v551 = vand.u32 2147483647, %v510
    %vm552 = vcmp.eq.f32.partialorder %v551, 8.507059e+37
    %v553 = vand.u32 %v510, 2147483648
    %v554 = vor.u32 1.1754944e-38, %v553
    %v555 = vsel %vm552, %v554, %v550
    %v556 = vmul.f32 1.0, %v555
    %v557 = vrcp.pop %v511
    %v558 = vmul.f32 %v511, %v557
    %v559 = vsub.f32 1.0, %v558
    %v560 = vmul.f32 %v557, %v559
    %v561 = vadd.f32 %v557, %v560
    %vm562 = vweird.f32 %v511
    %vm563 = vweird.f32 %v557
    %vm564 = vmor %vm562, %vm563
    %v565 = vsel %vm564, %v557, %v561
    %v566 = vand.u32 2147483647, %v511
    %vm567 = vcmp.eq.f32.partialorder %v566, 8.507059e+37
    %v568 = vand.u32 %v511, 2147483648
    %v569 = vor.u32 1.1754944e-38, %v568
    %v570 = vsel %vm567, %v569, %v565
    %v571 = vmul.f32 1.0, %v570
    %v572 = vmul.f32 %v526, %v42
    %v573 = vmul.f32 %v541, %v43
    %v574 = vmul.f32 %v556, %v44
    %v575 = vmul.f32 %v571, %v45
    %580 = vrot.lane.b32.xlu0 %v572, 4
    %v581 = vpop.permute.xlu0 %580
    %582 = vrot.lane.b32.xlu0 %v573, 4
    %v583 = vpop.permute.xlu0 %582
    %584 = vrot.lane.b32.xlu0 %v574, 4
    %v585 = vpop.permute.xlu0 %584
    %586 = vrot.lane.b32.xlu0 %v575, 4
    %v587 = vpop.permute.xlu0 %586
    %v592 = vsel %vm66, %v38, %v581
    %v593 = vsel %vm66, %v39, %v583
    %v594 = vsel %vm66, %v40, %v585
    %v595 = vsel %vm66, %v41, %v587
    %v596 = vpack.c.bf16 %v592, %v592
    %v597 = vpack.c.bf16 %v593, %v593
    %v598 = vpack.c.bf16 %v594, %v594
    %v599 = vpack.c.bf16 %v595, %v595
    %v602 = vunpack.c.l.b16 %v596
    %v603 = vunpack.c.l.b16 %v597
    %v604 = vpack.c.b16 %v603, %v602
    %606 = vmatpush.bf16.msra.mxu0 0
    %607 = vmatpush.bf16.msra.mxu0 0
    %608 = vmatpush.bf16.msra.mxu0 0
    %609 = vmatpush.bf16.msra.mxu0 0
    %610 = vmatpush.bf16.msra.mxu0 0
    %611 = vmatpush.bf16.msra.mxu0 0
    %612 = vmatpush.bf16.msra.mxu0 0
    %613 = vmatpush.bf16.msra.mxu0 %v604
    %614 = vmatmul.bf16.gmra.mxu0 %v88
    %v615 = vpop.f32.mrf.mxu0
    %v616 = vadd.f32 0.0, %v615
    %v617 = vpop.f32.mrf.mxu0
    %v618 = vadd.f32 0.0, %v617
    %619 = vdwg.mxu0
    %v622 = vunpack.c.l.b16 %v598
    %v623 = vunpack.c.l.b16 %v599
    %v624 = vpack.c.b16 %v623, %v622
    %626 = vmatpush.bf16.msra.mxu0 0
    %627 = vmatpush.bf16.msra.mxu0 0
    %628 = vmatpush.bf16.msra.mxu0 0
    %629 = vmatpush.bf16.msra.mxu0 0
    %630 = vmatpush.bf16.msra.mxu0 0
    %631 = vmatpush.bf16.msra.mxu0 0
    %632 = vmatpush.bf16.msra.mxu0 0
    %633 = vmatpush.bf16.msra.mxu0 %v624
    %634 = vmatmul.bf16.gmra.mxu0 %v88
    %v635 = vpop.f32.mrf.mxu0
    %v636 = vadd.f32 0.0, %v635
    %v637 = vpop.f32.mrf.mxu0
    %v638 = vadd.f32 0.0, %v637
    %639 = vdwg.mxu0
    %v640 = vpack.c.bf16 %v616, %v616
    %v641 = vpack.c.bf16 %v618, %v618
    %v642 = vpack.c.bf16 %v636, %v636
    %v643 = vpack.c.bf16 %v638, %v638
    %v646 = vunpack.c.l.b16 %v640
    %v647 = vunpack.c.l.b16 %v641
    %v648 = vpack.c.b16 %v647, %v646
    %650 = vmatpush.bf16.msra.mxu0 0
    %651 = vmatpush.bf16.msra.mxu0 0
    %652 = vmatpush.bf16.msra.mxu0 0
    %653 = vmatpush.bf16.msra.mxu0 0
    %654 = vmatpush.bf16.msra.mxu0 0
    %655 = vmatpush.bf16.msra.mxu0 0
    %656 = vmatpush.bf16.msra.mxu0 0
    %657 = vmatpush.bf16.msra.mxu0 %v648
    %658 = vmatmul.bf16.gmra.mxu0 %v88
    %v659 = vpop.f32.mrf.mxu0
    %v660 = vadd.f32 0.0, %v659
    %v661 = vpop.f32.mrf.mxu0
    %v662 = vadd.f32 0.0, %v661
    %663 = vdwg.mxu0
    %v666 = vunpack.c.l.b16 %v642
    %v667 = vunpack.c.l.b16 %v643
    %v668 = vpack.c.b16 %v667, %v666
    %670 = vmatpush.bf16.msra.mxu0 0
    %671 = vmatpush.bf16.msra.mxu0 0
    %672 = vmatpush.bf16.msra.mxu0 0
    %673 = vmatpush.bf16.msra.mxu0 0
    %674 = vmatpush.bf16.msra.mxu0 0
    %675 = vmatpush.bf16.msra.mxu0 0
    %676 = vmatpush.bf16.msra.mxu0 0
    %677 = vmatpush.bf16.msra.mxu0 %v668
    %678 = vmatmul.bf16.gmra.mxu0 %v88
    %v679 = vpop.f32.mrf.mxu0
    %v680 = vadd.f32 0.0, %v679
    %v681 = vpop.f32.mrf.mxu0
    %v682 = vadd.f32 0.0, %v681
    %683 = vdwg.mxu0
    %v684 = vmul.f32 %v660, 2.0
    %v685 = vmul.f32 %v662, 2.0
    %v686 = vmul.f32 %v680, 2.0
    %v687 = vmul.f32 %v682, 2.0
    %v688 = vsub.f32 %v684, %v592
    %v689 = vsub.f32 %v685, %v593
    %v690 = vsub.f32 %v686, %v594
    %v691 = vsub.f32 %v687, %v595
    %692 = vmatpush.bf16.msra.mxu0 0
    %693 = vmatpush.bf16.msra.mxu0 0
    %694 = vmatpush.bf16.msra.mxu0 0
    %695 = vmatpush.bf16.msra.mxu0 0
    %696 = vmatpush.bf16.msra.mxu0 0
    %697 = vmatpush.bf16.msra.mxu0 0
    %698 = vmatpush.bf16.msra.mxu0 0
    %699 = vmatpush.bf16.msra.mxu0 %v648
    %700 = vmatmul.bf16.gmra.mxu0 %v182
    %v701 = vpop.f32.mrf.mxu0
    %v702 = vadd.f32 0.0, %v701
    %v703 = vpop.f32.mrf.mxu0
    %v704 = vadd.f32 0.0, %v703
    %705 = vdwg.mxu0
    %706 = vmatpush.bf16.msra.mxu0 0
    %707 = vmatpush.bf16.msra.mxu0 0
    %708 = vmatpush.bf16.msra.mxu0 0
    %709 = vmatpush.bf16.msra.mxu0 0
    %710 = vmatpush.bf16.msra.mxu0 0
    %711 = vmatpush.bf16.msra.mxu0 0
    %712 = vmatpush.bf16.msra.mxu0 0
    %713 = vmatpush.bf16.msra.mxu0 %v668
    %714 = vmatmul.bf16.gmra.mxu0 %v182
    %v715 = vpop.f32.mrf.mxu0
    %v716 = vadd.f32 0.0, %v715
    %v717 = vpop.f32.mrf.mxu0
    %v718 = vadd.f32 0.0, %v717
    %719 = vdwg.mxu0
    %v720 = vpack.c.bf16 %v702, %v702
    %v721 = vpack.c.bf16 %v704, %v704
    %v722 = vpack.c.bf16 %v716, %v716
    %v723 = vpack.c.bf16 %v718, %v718
    %v726 = vunpack.c.l.b16 %v720
    %v727 = vunpack.c.l.b16 %v721
    %v728 = vpack.c.b16 %v727, %v726
    %730 = vmatpush.bf16.msra.mxu0 0
    %731 = vmatpush.bf16.msra.mxu0 0
    %732 = vmatpush.bf16.msra.mxu0 0
    %733 = vmatpush.bf16.msra.mxu0 0
    %734 = vmatpush.bf16.msra.mxu0 0
    %735 = vmatpush.bf16.msra.mxu0 0
    %736 = vmatpush.bf16.msra.mxu0 0
    %737 = vmatpush.bf16.msra.mxu0 %v728
    %738 = vmatmul.bf16.gmra.mxu0 %v182
    %v739 = vpop.f32.mrf.mxu0
    %v740 = vadd.f32 0.0, %v739
    %v741 = vpop.f32.mrf.mxu0
    %v742 = vadd.f32 0.0, %v741
    %743 = vdwg.mxu0
    %v746 = vunpack.c.l.b16 %v722
    %v747 = vunpack.c.l.b16 %v723
    %v748 = vpack.c.b16 %v747, %v746
    %750 = vmatpush.bf16.msra.mxu0 0
    %751 = vmatpush.bf16.msra.mxu0 0
    %752 = vmatpush.bf16.msra.mxu0 0
    %753 = vmatpush.bf16.msra.mxu0 0
    %754 = vmatpush.bf16.msra.mxu0 0
    %755 = vmatpush.bf16.msra.mxu0 0
    %756 = vmatpush.bf16.msra.mxu0 0
    %757 = vmatpush.bf16.msra.mxu0 %v748
    %758 = vmatmul.bf16.gmra.mxu0 %v182
    %v759 = vpop.f32.mrf.mxu0
    %v760 = vadd.f32 0.0, %v759
    %v761 = vpop.f32.mrf.mxu0
    %v762 = vadd.f32 0.0, %v761
    %763 = vdwg.mxu0
    %v764 = vmul.f32 %v740, 2.0
    %v765 = vmul.f32 %v742, 2.0
    %v766 = vmul.f32 %v760, 2.0
    %v767 = vmul.f32 %v762, 2.0
    %v768 = vsub.f32 %v764, %v616
    %v769 = vsub.f32 %v765, %v618
    %v770 = vsub.f32 %v766, %v636
    %v771 = vsub.f32 %v767, %v638
    %776 = vrot.lane.b32.xlu0 %v616, 36
    %v777 = vpop.permute.xlu0 %776
    %778 = vrot.lane.b32.xlu0 %v618, 36
    %v779 = vpop.permute.xlu0 %778
    %780 = vrot.lane.b32.xlu0 %v636, 36
    %v781 = vpop.permute.xlu0 %780
    %782 = vrot.lane.b32.xlu0 %v638, 36
    %v783 = vpop.permute.xlu0 %782
    %792 = vrot.lane.b32.xlu0 %v688, 72
    %v793 = vpop.permute.xlu0 %792
    %794 = vrot.lane.b32.xlu0 %v689, 72
    %v795 = vpop.permute.xlu0 %794
    %796 = vrot.lane.b32.xlu0 %v690, 72
    %v797 = vpop.permute.xlu0 %796
    %798 = vrot.lane.b32.xlu0 %v691, 72
    %v799 = vpop.permute.xlu0 %798
    %808 = vrot.lane.b32.xlu0 %v702, 108
    %v809 = vpop.permute.xlu0 %808
    %810 = vrot.lane.b32.xlu0 %v704, 108
    %v811 = vpop.permute.xlu0 %810
    %812 = vrot.lane.b32.xlu0 %v716, 108
    %v813 = vpop.permute.xlu0 %812
    %814 = vrot.lane.b32.xlu0 %v718, 108
    %v815 = vpop.permute.xlu0 %814
    %824 = vrot.lane.b32.xlu0 %v768, 16
    %v825 = vpop.permute.xlu0 %824
    %826 = vrot.lane.b32.xlu0 %v769, 16
    %v827 = vpop.permute.xlu0 %826
    %828 = vrot.lane.b32.xlu0 %v770, 16
    %v829 = vpop.permute.xlu0 %828
    %830 = vrot.lane.b32.xlu0 %v771, 16
    %v831 = vpop.permute.xlu0 %830
    %v836 = vsel %vm328, %v592, %v777
    %v837 = vsel %vm328, %v593, %v779
    %v838 = vsel %vm328, %v594, %v781
    %v839 = vsel %vm328, %v595, %v783
    %v840 = vsel %vm333, %v836, %v793
    %v841 = vsel %vm333, %v837, %v795
    %v842 = vsel %vm333, %v838, %v797
    %v843 = vsel %vm333, %v839, %v799
    %v844 = vsel %vm338, %v840, %v809
    %v845 = vsel %vm338, %v841, %v811
    %v846 = vsel %vm338, %v842, %v813
    %v847 = vsel %vm338, %v843, %v815
    %v848 = vsel %vm86, %v809, %v825
    %v849 = vsel %vm86, %v811, %v827
    %v850 = vsel %vm86, %v813, %v829
    %v851 = vsel %vm86, %v815, %v831
    %v852 = vpack.c.bf16 %v845, %v844
    %v853 = vpack.c.bf16 %v849, %v848
    %v854 = vpack.c.bf16 %v847, %v846
    %v855 = vpack.c.bf16 %v851, %v850
    %v856 = vld [vmem:[%s5] sm:$0xf]
    %v857 = vld [vmem:[%s5 + $0x4] sm:$0xf]
    %v858 = vld [vmem:[%s5 + $0x8] sm:$0xf]
    %v859 = vld [vmem:[%s5 + $0xc] sm:$0xf]
    %v860 = vld [vmem:[%s5 + $0x10] sm:$0xf]
    %v861 = vld [vmem:[%s5 + $0x14] sm:$0xf]
    %v862 = vld [vmem:[%s5 + $0x18] sm:$0xf]
    %v863 = vld [vmem:[%s5 + $0x1c] sm:$0xf]
    %v864 = vld [vmem:[%s5 + $0x20] sm:$0xf]
    %v865 = vld [vmem:[%s5 + $0x24] sm:$0xf]
    %v866 = vld [vmem:[%s5 + $0x28] sm:$0xf]
    %v867 = vld [vmem:[%s5 + $0x2c] sm:$0xf]
    %v868 = vld [vmem:[%s5 + $0x30] sm:$0xf]
    %v869 = vld [vmem:[%s5 + $0x34] sm:$0xf]
    %v870 = vld [vmem:[%s5 + $0x38] sm:$0xf]
    %v871 = vld [vmem:[%s5 + $0x3c] sm:$0xf]
    %v872 = vld [vmem:[%s5 + $0x40] sm:$0xf]
    %v873 = vld [vmem:[%s5 + $0x44] sm:$0xf]
    %v874 = vld [vmem:[%s5 + $0x48] sm:$0xf]
    %v875 = vld [vmem:[%s5 + $0x4c] sm:$0xf]
    %v876 = vld [vmem:[%s5 + $0x50] sm:$0xf]
    %v877 = vld [vmem:[%s5 + $0x54] sm:$0xf]
    %v878 = vld [vmem:[%s5 + $0x58] sm:$0x3]
    %v879 = vld [vmem:[%s6] sm:$0x1]
    %v881 = vperm.slane %v879, 0
    %v906 = vunpack.c.l.b16 %v856
    %v907 = vunpack.c.l.b16 %v857
    %v908 = vunpack.c.l.b16 %v858
    %v909 = vunpack.c.l.b16 %v859
    %v910 = vunpack.c.l.b16 %v860
    %v911 = vunpack.c.l.b16 %v861
    %v912 = vunpack.c.l.b16 %v862
    %v913 = vunpack.c.l.b16 %v863
    %v914 = vunpack.c.l.b16 %v864
    %v915 = vunpack.c.l.b16 %v865
    %v916 = vunpack.c.l.b16 %v866
    %v917 = vunpack.c.l.b16 %v867
    %v918 = vunpack.c.l.b16 %v868
    %v919 = vunpack.c.l.b16 %v869
    %v920 = vunpack.c.l.b16 %v870
    %v921 = vunpack.c.l.b16 %v871
    %v922 = vunpack.c.l.b16 %v872
    %v923 = vunpack.c.l.b16 %v873
    %v924 = vunpack.c.l.b16 %v874
    %v925 = vunpack.c.l.b16 %v875
    %v926 = vunpack.c.l.b16 %v876
    %v927 = vunpack.c.l.b16 %v877
    %v928 = vunpack.c.l.b16 %v878
    %v929 = vpack.c.b16 %v907, %v906
    %v930 = vpack.c.b16 %v909, %v908
    %v931 = vpack.c.b16 %v911, %v910
    %v932 = vpack.c.b16 %v913, %v912
    %v933 = vpack.c.b16 %v915, %v914
    %v934 = vpack.c.b16 %v917, %v916
    %v935 = vpack.c.b16 %v919, %v918
    %v936 = vpack.c.b16 %v921, %v920
    %v937 = vpack.c.b16 %v923, %v922
    %v938 = vpack.c.b16 %v925, %v924
    %v939 = vpack.c.b16 %v927, %v926
    %v940 = vpack.c.b16 %v928, %v928
    %v953 = vsel %vm447, %v853, 0
    %v956 = vsel %vm447, %v855, 0
    %v959 = vsel %vm454, %v940, 0
    %961 = vmatpush.bf16.msra.mxu0 %v936
    %962 = vmatpush.bf16.msra.mxu0 %v935
    %963 = vmatpush.bf16.msra.mxu0 %v934
    %964 = vmatpush.bf16.msra.mxu0 %v933
    %965 = vmatpush.bf16.msra.mxu0 %v932
    %966 = vmatpush.bf16.msra.mxu0 %v931
    %967 = vmatpush.bf16.msra.mxu0 %v930
    %968 = vmatpush.bf16.msra.mxu0 %v929
    %969 = vmatmul.bf16.gmra.mxu0 %v852
    %v970 = vpop.f32.mrf.mxu0
    %v971 = vadd.f32 %v881, %v970
    %v972 = vpop.f32.mrf.mxu0
    %v973 = vadd.f32 %v881, %v972
    %974 = vmatmul.bf16.gmra.mxu0 %v854
    %v975 = vpop.f32.mrf.mxu0
    %v976 = vadd.f32 %v881, %v975
    %v977 = vpop.f32.mrf.mxu0
    %v978 = vadd.f32 %v881, %v977
    %979 = vdwg.mxu0
    %980 = vmatpush.bf16.msra.mxu0 0
    %981 = vmatpush.bf16.msra.mxu0 0
    %982 = vmatpush.bf16.msra.mxu0 0
    %983 = vmatpush.bf16.msra.mxu0 0
    %984 = vmatpush.bf16.msra.mxu0 %v959
    %985 = vmatpush.bf16.msra.mxu0 %v939
    %986 = vmatpush.bf16.msra.mxu0 %v938
    %987 = vmatpush.bf16.msra.mxu0 %v937
    %988 = vmatmul.bf16.gmra.mxu0 %v953
    %v989 = vpop.f32.mrf.mxu0
    %v990 = vadd.f32 %v971, %v989
    %v991 = vpop.f32.mrf.mxu0
    %v992 = vadd.f32 %v973, %v991
    %993 = vmatmul.bf16.gmra.mxu0 %v956
    %v994 = vpop.f32.mrf.mxu0
    %v995 = vadd.f32 %v976, %v994
    %v996 = vpop.f32.mrf.mxu0
    %v997 = vadd.f32 %v978, %v996
    %998 = vdwg.mxu0
    %v999 = vtanh.pop %v990
    %v1000 = vtanh.pop %v992
    %v1001 = vtanh.pop %v995
    %v1002 = vtanh.pop %v997
    %1003 = vrot.lane.b32.xlu0 %v42, 32
    %v1004 = vpop.permute.xlu0 %1003
    %1005 = vrot.lane.b32.xlu0 %v43, 32
    %v1006 = vpop.permute.xlu0 %1005
    %1007 = vrot.lane.b32.xlu0 %v44, 32
    %v1008 = vpop.permute.xlu0 %1007
    %1009 = vrot.lane.b32.xlu0 %v45, 32
    %v1010 = vpop.permute.xlu0 %1009
    %v1015 = vmul.f32 %v526, %v1004
    %v1016 = vmul.f32 %v541, %v1006
    %v1017 = vmul.f32 %v556, %v1008
    %v1018 = vmul.f32 %v571, %v1010
    %v1019 = vsub.f32 1.0, %v526
    %v1020 = vsub.f32 1.0, %v541
    %v1021 = vsub.f32 1.0, %v556
    %v1022 = vsub.f32 1.0, %v571
    %1027 = vrot.lane.b32.xlu0 %v999, 32
    %v1028 = vpop.permute.xlu0 %1027
    %1029 = vrot.lane.b32.xlu0 %v1000, 32
    %v1030 = vpop.permute.xlu0 %1029
    %1031 = vrot.lane.b32.xlu0 %v1001, 32
    %v1032 = vpop.permute.xlu0 %1031
    %1033 = vrot.lane.b32.xlu0 %v1002, 32
    %v1034 = vpop.permute.xlu0 %1033
    %v1039 = vmul.f32 %v1019, %v1028
    %v1040 = vmul.f32 %v1020, %v1030
    %v1041 = vmul.f32 %v1021, %v1032
    %v1042 = vmul.f32 %v1022, %v1034
    %v1043 = vadd.f32 %v1015, %v1039
    %v1044 = vadd.f32 %v1016, %v1040
    %v1045 = vadd.f32 %v1017, %v1041
    %v1046 = vadd.f32 %v1018, %v1042
    %1051 = vrot.lane.b32.xlu0 %v1043, 96
    %v1052 = vpop.permute.xlu0 %1051
    %1053 = vrot.lane.b32.xlu0 %v1044, 96
    %v1054 = vpop.permute.xlu0 %1053
    %1055 = vrot.lane.b32.xlu0 %v1045, 96
    %v1056 = vpop.permute.xlu0 %1055
    %1057 = vrot.lane.b32.xlu0 %v1046, 96
    %v1058 = vpop.permute.xlu0 %1057
    %vm1063 = vcmask 261120
    %1064 = vst.msk [vmem:[#allocation3] sm:$0xff] %vm1063, %v1052
    %1065 = vst.msk [vmem:[#allocation3 + $0x8] sm:$0xff] %vm1063, %v1054
    %1066 = vst.msk [vmem:[#allocation3 + $0x10] sm:$0xff] %vm1063, %v1056
    %1067 = vst.msk [vmem:[#allocation3 + $0x18] sm:$0xff] %vm1063, %v1058
    %v1068 = vld [vmem:[%s7] sm:$0x1]
    %v1070 = vperm.slane %v1068, 0
    %1071 = vrot.lane.b32.xlu0 %v1070, 32
    %v1072 = vpop.permute.xlu0 %1071
    %v1074 = vmul.f32 %v1043, %v1072
    %v1075 = vmul.f32 %v1044, %v1072
    %v1076 = vmul.f32 %v1045, %v1072
    %v1077 = vmul.f32 %v1046, %v1072
    %1082 = vrot.lane.b32.xlu0 %v1074, 96
    %v1083 = vpop.permute.xlu0 %1082
    %1084 = vrot.lane.b32.xlu0 %v1075, 96
    %v1085 = vpop.permute.xlu0 %1084
    %1086 = vrot.lane.b32.xlu0 %v1076, 96
    %v1087 = vpop.permute.xlu0 %1086
    %1088 = vrot.lane.b32.xlu0 %v1077, 96
    %v1089 = vpop.permute.xlu0 %1088
    %v1094 = vsel %vm1063, %v1083, 0.0
    %1095 = vadd.xlane.f32.xlu0 %v1094
    %v1096 = vpop.xlane.xlu0 %1095
    %v1097 = vsel %vm1063, %v1085, 0.0
    %1098 = vadd.xlane.f32.xlu0 %v1097
    %v1099 = vpop.xlane.xlu0 %1098
    %v1100 = vsel %vm1063, %v1087, 0.0
    %1101 = vadd.xlane.f32.xlu0 %v1100
    %v1102 = vpop.xlane.xlu0 %1101
    %v1103 = vsel %vm1063, %v1089, 0.0
    %1104 = vadd.xlane.f32.xlu0 %v1103
    %v1105 = vpop.xlane.xlu0 %1104
    %v1106 = vld [vmem:[#allocation2] sm:$0x1]
    %v1108 = vperm.slane %v1106, 0
    %v1110 = vadd.f32 %v1096, %v1108
    %v1111 = vadd.f32 %v1099, %v1108
    %v1112 = vadd.f32 %v1102, %v1108
    %v1113 = vadd.f32 %v1105, %v1108
    %vm1114 = vcmask 7168
    %1115 = vst.msk [vmem:[%s10] sm:$0xff] %vm1114, %v1110
    %1116 = vst.msk [vmem:[%s10 + $0x8] sm:$0xff] %vm1114, %v1111
    %1117 = vst.msk [vmem:[%s10 + $0x10] sm:$0xff] %vm1114, %v1112
    %1118 = vst.msk [vmem:[%s10 + $0x18] sm:$0xff] %vm1114, %v1113
    // Predicated region
    $region38: #{tpu_custom_call.1} parent=1 // pred_check
      _
    $region39: #{tpu_custom_call.1} parent=1 // pred_check_branch
      %1120 = sbr.rel (0) target = $region41
    $region40: #{tpu_custom_call.1} parent=1 // pred_region
      %1122 = vsyncadd [#allocation4], 0
      %s1123 = sshll.u32 [#allocation3], 4
      %s1124 = int_to_ptr.vmem [resolvable:$true] %s1123
      %s1125 = sshll.u32 %s9, 4
      %s1126 = int_to_ptr.hbm [resolvable:$true] %s1125
      %1131 = dma.vmem_to_hbm [thread:$0]  %s1124, 512, %s1126, [#allocation4], 128, 128, 8
    $region41: #{tpu_custom_call.1} parent=1 // pred_fallthru
      _
    // Predicated region
    $region42: #{tpu_custom_call.1} parent=1 // pred_check
      _
    $region43: #{tpu_custom_call.1} parent=1 // pred_check_branch
      %1133 = sbr.rel (0) target = $region45
    $region44: #{tpu_custom_call.1} parent=1 // pred_region
      _
    $region45: #{tpu_custom_call.1} parent=1 // pred_fallthru
      _
    // Predicated region
    $region46: #{tpu_custom_call.1} parent=1 // pred_check
      _
    $region47: #{tpu_custom_call.1} parent=1 // pred_check_branch
      %1135 = sbr.rel (0) target = $region49
    $region48: #{tpu_custom_call.1} parent=1 // pred_region
      %1137 = dma.done [#allocation4], 512
    $region49: #{tpu_custom_call.1} parent=1 // pred_fallthru
      _
    // Predicated region
    $region50: #{tpu_custom_call.1} parent=1 // pred_check
      _
    $region51: #{tpu_custom_call.1} parent=1 // pred_check_branch
      %1139 = sbr.rel (0) target = $region53
    $region52: #{tpu_custom_call.1} parent=1 // pred_region
      _
    $region53: #{tpu_custom_call.1} parent=1 // pred_fallthru
      _
    %1140 = vsyncpa [#allocation4], 1

</llo_original>
